<compile_context>
chip_gen: v7x
topology: tpu7x:2x2x1
jax: 0.10.0
libtpu: 0.0.40
codegen_flags: <defaults>
</compile_context>

<pallas_src>
import jax
import jax.numpy as jnp
from jax.experimental import pallas as pl
from jax.experimental.pallas import tpu as pltpu


# ----------------------------------------------------------------------------
# Python-side mirror of NetBase.__init__ (pure bookkeeping, no parameters).
# ----------------------------------------------------------------------------
class Space:
    """Tiny stand-in for gym.spaces.Box / gym.spaces.Discrete."""

    def __init__(self, shape=(), n=None):
        self.shape = tuple(shape)
        self.n = n


class NetBase:
    """Base network class for policy/value function (JAX/Pallas port)."""

    def __init__(self, state_space, action_space=None):
        self._state_space = state_space
        self._state_shape = state_space.shape
        if len(self._state_shape) == 1:
            self._state_dim = self._state_shape[0]
        else:
            pass  # image-like state: subclass handles it
        if action_space is not None:
            self._action_space = action_space
            self._action_shape = action_space.shape
            if len(self._action_shape) < 1:
                self._action_dim = action_space.n
            else:
                self._action_dim = self._action_shape[0]

    def forward(self, x, use_pallas_kernel=False):
        """Base-class forward: identity on the state tensor.

        Per perf review, the default path returns the input directly (a
        kernel launch buys nothing for an identity).  `use_pallas_kernel=True`
        runs the tiled, aliased Pallas identity kernel instead (the plumbing
        a compute subclass would build on).  NOTE: the Pallas path donates
        its argument — do not reuse `x` after the call.
        """
        if not use_pallas_kernel:
            return x
        return _identity_pallas_jit(x)


# ----------------------------------------------------------------------------
# Pallas kernel: zero-copy identity on a lane-dense, row-tiled state slab.
# ----------------------------------------------------------------------------
def _identity_kernel(x_ref, o_ref):
    # Whole-tile load + store; with HBM-level input/output aliasing (and a
    # donated jit argument) this writes back into the same buffer.
    o_ref[...] = x_ref[...]


_LANE = 128                          # vreg lane width
_TARGET_TILE_BYTES = 2 * 1024 * 1024  # ~2 MiB/tile; x4 (in+out double-buffered)
                                      # = 8 MiB, fits v5e's 16 MiB scoped VMEM
_ROW_ALIGN = 32                       # clean sublane packing for f32/bf16/i8/fp8


def _pick_lane_width(n):
    """Widest 128-multiple lane width that exactly divides n (else None)."""
    for w in (2048, 1024, 512, 256, 128):
        if n % w == 0:
            return w
    return None


def _identity_pallas(x):
    orig_shape = x.shape
    n = x.size
    itemsize = jnp.dtype(x.dtype).itemsize

    w = _pick_lane_width(n)
    if w is not None:
        flat = x.reshape(n // w, w)
        pad = 0
    else:
        # No 128-multiple divisor: lane-pad the flat vector so stores stay
        # unmasked `vst` (never present a last dim < 128).
        w = _LANE
        rows = pl.cdiv(n, w)
        pad = rows * w - n
        flat = jnp.pad(x.reshape(-1), (0, pad)).reshape(rows, w)

    rows, cols = flat.shape

    # Row tile: ~2 MiB per tile, multiple of 32 rows, or the whole array when
    # it is smaller than one tile (full-dim blocks bypass the (8,128) rule).
    max_rows = max(
        _ROW_ALIGN,
        (_TARGET_TILE_BYTES // (cols * itemsize)) // _ROW_ALIGN * _ROW_ALIGN,
    )
    tb = rows if rows <= max_rows else max_rows
    grid = (pl.cdiv(rows, tb),)

    out_flat = pl.pallas_call(
        _identity_kernel,
        out_shape=jax.ShapeDtypeStruct((rows, cols), flat.dtype),
        grid_spec=pl.GridSpec(
            grid=grid,
            in_specs=[pl.BlockSpec((tb, cols), lambda i: (i, 0))],
            out_specs=pl.BlockSpec((tb, cols), lambda i: (i, 0)),
        ),
        # Output HBM buffer aliases the input buffer (effective because the
        # jit wrapper donates the argument).
        input_output_aliases={0: 0},
        # Pure-bandwidth op: tell the XLA scheduler so it can overlap it.
        cost_estimate=pl.CostEstimate(
            flops=0,
            transcendentals=0,
            bytes_accessed=2 * rows * cols * itemsize,
        ),
        compiler_params=pltpu.CompilerParams(
            dimension_semantics=("parallel",),
        ),
    )(flat)

    out = out_flat.reshape(-1)
    if pad:
        out = out[:n]
    return out.reshape(orig_shape)


# Donate the state arg so the {0: 0} alias actually avoids a defensive copy.
_identity_pallas_jit = jax.jit(_identity_pallas, donate_argnums=0)


# ----------------------------------------------------------------------------
# Driver
# ----------------------------------------------------------------------------
if __name__ == "__main__":
    key = jax.random.PRNGKey(0)

    batch = 8
    state_dim = 32
    action_dim = 4

    state_space = Space(shape=(state_dim,))
    action_space = Space(shape=(), n=action_dim)  # discrete action space

    net = NetBase(state_space, action_space)
    assert net._state_dim == state_dim
    assert net._action_dim == action_dim

    x = jax.random.normal(key, (batch, state_dim), dtype=jnp.float32)
    # Host-side reference snapshot: the Pallas path donates + aliases the
    # input buffer, so compare against the snapshot rather than `x` itself.
    x_host = jax.device_get(x)

    # Default (recommended) path: pure-JAX identity, no kernel launch.
    y_fast = net.forward(x)
    assert y_fast is x

    # Pallas path: run the kernel once (donates `x`; do not reuse it after).
    y = net.forward(x, use_pallas_kernel=True)
    y = jax.block_until_ready(y)

    # Identity semantics check.
    assert y.shape == (batch, state_dim) and y.dtype == jnp.float32
    assert bool(jnp.allclose(y, jnp.asarray(x_host)))

    print("KERNEL_OK")
</pallas_src>

<mosaic_0001>
module attributes {stable_mosaic.version = 11 : i64} {
  func.func @_identity_kernel(%arg0: i32, %arg1: memref<1x256xf32, #tpu.memory_space<vmem>>, %arg2: memref<1x256xf32, #tpu.memory_space<vmem>>) attributes {dimension_semantics = [#tpu.dimension_semantics<parallel>], iteration_bounds = array<i64: 1>, scalar_prefetch = 0 : i64, scratch_operands = 0 : i64, tpu.core_type = #tpu.core_type<tc>, window_params = [{transform_indices = @transform_0, window_bounds = array<i64: 1, 256>}, {transform_indices = @transform_1, window_bounds = array<i64: 1, 256>}]} {
    %c0 = arith.constant 0 : index
    %c0_0 = arith.constant 0 : index
    %0 = vector.load %arg1[%c0, %c0_0] : memref<1x256xf32, #tpu.memory_space<vmem>>, vector<1x256xf32>
    %c0_1 = arith.constant 0 : index
    %c0_2 = arith.constant 0 : index
    %1 = vector.load %arg2[%c0_1, %c0_2] : memref<1x256xf32, #tpu.memory_space<vmem>>, vector<1x256xf32>
    tpu.vector_store %arg2[%c0_1, %c0_2], %0 {strides = array<i32>} : memref<1x256xf32, #tpu.memory_space<vmem>>, vector<1x256xf32>,
    return
  }
  func.func @transform_0(%arg0: i32) -> (i32, i32) {
    %c0_i32 = arith.constant 0 : i32
    %c0_i32_0 = arith.constant 0 : i32
    return %arg0, %c0_i32 : i32, i32
  }
  func.func @transform_1(%arg0: i32) -> (i32, i32) {
    %c0_i32 = arith.constant 0 : i32
    %c0_i32_0 = arith.constant 0 : i32
    return %arg0, %c0_i32 : i32, i32
  }
}

</mosaic_0001>

<llo_original>
// kernel: _identity_pallas.1
$region0: #{_identity_pallas.1}
  #allocation0 [shape = 'u32[]', space=smem, size = 0x4, offset = 0x4, fixed_abs, tag = 'smem constant byte address 0x4 - core index']
  #allocation1 [shape = 'u32[144,128]{1,0:T(1,128)}', space=vmem, size = 0x12000, scoped, tag = 'internal scratch']
  %s0 = inlined_call_operand.vmem [shape: f32[1,256], index: 0, kind: input, shape index: {}, may-alias: {0,1}]
  %s1 = inlined_call_operand.vmem [shape: f32[1,256], index: 1, kind: output, shape index: {}, may-alias: {0,1}]
  %s2 = sld [smem:[#allocation0]]
  $region14: #{_identity_pallas.1} parent=0
    _
  %s4 = ssub.s32 1, %s2
  %s5 = scalar_select 0, %s4, %s2
  // Predicated region
  $region2: #{_identity_pallas.1} parent=0 // pred_check
    _
  $region3: #{_identity_pallas.1} parent=0 // pred_check_branch
    %7 = sbr.rel (0) target = $region5
  $region4: #{_identity_pallas.1} parent=0 // pred_region
    _
  $region5: #{_identity_pallas.1} parent=0 // pred_fallthru
    _
  %v8 = vld [vmem:[%s0] sm:$0x3]
  %v9 = vlaneseq
  %vm10 = vcmp.ge.s32.totalorder %v9, 0
  %vm11 = vcmp.lt.s32.totalorder %v9, 256
  %vm12 = vmand %vm10, %vm11
  %13 = vst.msk [vmem:[%s1] sm:$0x3] %vm12, %v8
  // Predicated region
  $region6: #{_identity_pallas.1} parent=0 // pred_check
    _
  $region7: #{_identity_pallas.1} parent=0 // pred_check_branch
    %15 = sbr.rel (0) target = $region9
  $region8: #{_identity_pallas.1} parent=0 // pred_region
    _
  $region9: #{_identity_pallas.1} parent=0 // pred_fallthru
    _
  // Predicated region
  $region10: #{_identity_pallas.1} parent=0 // pred_check
    _
  $region11: #{_identity_pallas.1} parent=0 // pred_check_branch
    %17 = sbr.rel (0) target = $region13
  $region12: #{_identity_pallas.1} parent=0 // pred_region
    _
  $region13: #{_identity_pallas.1} parent=0 // pred_fallthru
    _

</llo_original>
